<compile_context>
chip_gen: v7x
topology: tpu7x:2x2x1
jax: 0.10.0
libtpu: 0.0.40
codegen_flags: <defaults>
</compile_context>

<pallas_src>
import functools

import numpy as np
import jax
import jax.numpy as jnp
from jax.experimental import pallas as pl
from jax.experimental.pallas import tpu as pltpu


def _round_up(x, m):
    return (x + m - 1) // m * m


# --------------------- deterministic parameter construction -----------------

def _hz_to_mel(freqs):
    # Slaney mel scale (librosa default, htk=False)
    freqs = np.atleast_1d(np.asarray(freqs, dtype=np.float64)).copy()
    f_min, f_sp = 0.0, 200.0 / 3
    mels = (freqs - f_min) / f_sp
    min_log_hz = 1000.0
    min_log_mel = (min_log_hz - f_min) / f_sp
    logstep = np.log(6.4) / 27.0
    log_t = freqs >= min_log_hz
    mels[log_t] = min_log_mel + np.log(freqs[log_t] / min_log_hz) / logstep
    return mels


def _mel_to_hz(mels):
    mels = np.atleast_1d(np.asarray(mels, dtype=np.float64)).copy()
    f_min, f_sp = 0.0, 200.0 / 3
    freqs = f_min + f_sp * mels
    min_log_hz = 1000.0
    min_log_mel = (min_log_hz - f_min) / f_sp
    logstep = np.log(6.4) / 27.0
    log_t = mels >= min_log_mel
    freqs[log_t] = min_log_hz * np.exp(logstep * (mels[log_t] - min_log_mel))
    return freqs


def _librosa_mel_fn(sr, n_fft, n_mels, fmin, fmax):
    # Equivalent to librosa.filters.mel(sr, n_fft, n_mels, fmin, fmax)
    n_freq = 1 + n_fft // 2
    fftfreqs = np.linspace(0.0, sr / 2.0, n_freq, endpoint=True)
    mel_pts = _mel_to_hz(
        np.linspace(_hz_to_mel(fmin)[0], _hz_to_mel(fmax)[0], n_mels + 2))
    fdiff = np.diff(mel_pts)
    ramps = mel_pts[:, None] - fftfreqs[None, :]
    weights = np.zeros((n_mels, n_freq), dtype=np.float64)
    for i in range(n_mels):
        lower = -ramps[i] / fdiff[i]
        upper = ramps[i + 2] / fdiff[i + 1]
        weights[i] = np.maximum(0.0, np.minimum(lower, upper))
    enorm = 2.0 / (mel_pts[2:n_mels + 2] - mel_pts[:n_mels])  # Slaney norm
    weights *= enorm[:, None]
    return weights.astype(np.float32)


def _stft_forward_basis(filter_length, win_length):
    # Mirrors Tacotron2 STFT.__init__: windowed real/imag DFT basis.
    fourier_basis = np.fft.fft(np.eye(filter_length))
    cutoff = int(filter_length / 2 + 1)
    fb = np.vstack([np.real(fourier_basis[:cutoff, :]),
                    np.imag(fourier_basis[:cutoff, :])])
    # periodic Hann window == scipy get_window('hann', M, fftbins=True)
    n = np.arange(win_length)
    win = 0.5 - 0.5 * np.cos(2.0 * np.pi * n / win_length)
    # pad_center(win, filter_length) is a no-op (win_length == filter_length)
    fb = fb * win[None, :]
    return fb.astype(np.float32), cutoff


# ------------------------------ Pallas kernel --------------------------------

def _mel_fbank_kernel(frames_ref, basis_ref, melT_ref, out_ref, *, f_pad):
    # frames_ref: (TILE_T, 401)       bf16   (true window length, no K pad)
    # basis_ref : (401, 2*F_pad=512)  bf16   ([real | imag], each 128-aligned)
    # melT_ref  : (F_pad=256, M_pad=128) bf16
    # out_ref   : (M_pad=128, TILE_T) f32    (transposed, lane-dense store)
    spec = jnp.dot(frames_ref[...], basis_ref[...],
                   preferred_element_type=jnp.float32)        # one MXU pass
    real = spec[:, :f_pad]
    imag = spec[:, f_pad:]
    mag = jnp.sqrt(real * real + imag * imag)                 # f32, VPU/EUP
    mel = jnp.dot(mag.astype(jnp.bfloat16), melT_ref[...],
                  preferred_element_type=jnp.float32)         # (TILE_T, 128)
    # dynamic_range_compression: log(clamp(x, min=1e-5) * 1); transpose (XLU)
    out_ref[...] = jnp.log(jnp.maximum(mel, 1e-5)).T


# ------------------------------- wrapper --------------------------------------

class MelFilterbanksPallas:
    MAX_TILE_T = 512   # frame rows per grid step (cap); tile is adaptive

    def __init__(self, n_filters=40, sample_rate=16000, n_fft=512,
                 window_len=25.0, window_stride=10.0,
                 min_freq=60.0, max_freq=7800.0):
        # n_fft is unused in the reference module too (filter_length = window_len)
        self.n_filters = n_filters
        self.filter_length = int(sample_rate * window_len // 1000 + 1)   # 401
        self.hop_length = int(sample_rate * window_stride // 1000)       # 160
        max_freq = max_freq if max_freq else sample_rate / 2.0

        fb, cutoff = _stft_forward_basis(self.filter_length, self.filter_length)
        self.cutoff = cutoff                                              # 201
        mel_basis = _librosa_mel_fn(sample_rate, self.filter_length,
                                    n_filters, min_freq, max_freq)        # (40, 201)

        self.F_pad = _round_up(cutoff, 128)                               # 256
        self.M_pad = _round_up(n_filters, 128)                            # 128

        # fused [real | imag] basis at the TRUE window length: (401, 512)
        fused = np.zeros((self.filter_length, 2 * self.F_pad), np.float32)
        fused[:, :cutoff] = fb[:cutoff].T
        fused[:, self.F_pad:self.F_pad + cutoff] = fb[cutoff:].T
        melT = np.zeros((self.F_pad, self.M_pad), np.float32)
        melT[:cutoff, :n_filters] = mel_basis.T

        # bf16 operands for the MXU (f32 accumulation in-kernel).
        # On v6e/v7x these could be f32 for free (kernel is memory-bound);
        # kept bf16 so v5e (MXU-bound) does not pay 3x matmul passes.
        self.basis = jnp.asarray(fused, dtype=jnp.bfloat16)
        self.melT = jnp.asarray(melT, dtype=jnp.bfloat16)

        # unpadded f32 copies for the reference checks
        self._br_f32 = jnp.asarray(fb[:cutoff].T)         # (401, 201)
        self._bi_f32 = jnp.asarray(fb[cutoff:].T)         # (401, 201)
        self._melT_f32 = jnp.asarray(mel_basis.T)         # (201, 40)

    # ---------------------------- framing -----------------------------------

    def n_frames(self, num_samples):
        # same count as reflect-pad(200) + window 401 + hop 160
        return (num_samples - 1) // self.hop_length + 1

    def _gather_frames(self, y, r_pad):
        """Reflect pad + im2col framing + bf16 cast fused into ONE gather.

        Padded rows (>= B*n_frames) reuse row 0's indices (real data, no NaN)
        and are sliced off after the kernel.
        """
        B, N = y.shape
        n_frames = self.n_frames(N)
        total_rows = B * n_frames
        pad = self.filter_length // 2                      # 200

        r = jnp.arange(r_pad, dtype=jnp.int32)
        r = jnp.minimum(r, total_rows - 1)                 # clamp pad rows
        b = r // n_frames
        t = r % n_frames
        w = jnp.arange(self.filter_length, dtype=jnp.int32)
        s = t[:, None] * self.hop_length + w[None, :] - pad
        s = jnp.where(s < 0, -s, s)                        # reflect (left)
        s = jnp.where(s >= N, 2 * (N - 1) - s, s)          # reflect (right)
        flat = b[:, None] * N + s
        return y.reshape(-1)[flat].astype(jnp.bfloat16)    # (r_pad, 401) bf16

    def _choose_tiling(self, total_rows):
        """Adaptive row tile: big tiles for long audio, >=2 tiles when it pays
        (v7x megacore), exact small single tile for tiny inputs."""
        rows8 = _round_up(max(total_rows, 8), 8)
        if rows8 <= 128:
            return rows8, rows8, 1                         # single exact tile
        tile = min(self.MAX_TILE_T, _round_up((rows8 + 1) // 2, 128))
        r_pad = _round_up(rows8, tile)
        return tile, r_pad, r_pad // tile                  # always >= 2 tiles

    # ---------------------------- forward ------------------------------------

    def __call__(self, y):
        B, N = y.shape
        assert N > self.filter_length // 2, \
            "reflect padding requires num_samples > filter_length // 2"
        n_frames = self.n_frames(N)
        total_rows = B * n_frames
        tile_t, r_pad, n_tiles = self._choose_tiling(total_rows)

        frames = self._gather_frames(y, r_pad)             # (r_pad, 401) bf16

        W = self.filter_length
        F2 = 2 * self.F_pad

        flops = 2 * r_pad * (W * F2 + self.F_pad * self.M_pad)
        transcendentals = r_pad * (self.F_pad + self.M_pad)
        bytes_accessed = (frames.size * 2 + self.basis.size * 2
                          + self.melT.size * 2 + self.M_pad * r_pad * 4)

        # double-buffered operands + f32 intermediates, with 2x headroom
        vmem_bytes = (2 * (tile_t * W * 2 + W * F2 * 2
                           + self.F_pad * self.M_pad * 2
                           + self.M_pad * tile_t * 4)
                      + tile_t * (F2 + self.F_pad + 2 * self.M_pad) * 4)
        vmem_limit = int(min(64 * 2**20, max(4 * 2**20, 2 * vmem_bytes)))

        out = pl.pallas_call(
            functools.partial(_mel_fbank_kernel, f_pad=self.F_pad),
            out_shape=jax.ShapeDtypeStruct((self.M_pad, r_pad), jnp.float32),
            grid=(n_tiles,),
            in_specs=[
                pl.BlockSpec((tile_t, W), lambda i: (i, 0)),
                pl.BlockSpec((W, F2), lambda i: (0, 0)),
                pl.BlockSpec((self.F_pad, self.M_pad), lambda i: (0, 0)),
            ],
            out_specs=pl.BlockSpec((self.M_pad, tile_t), lambda i: (0, i)),
            compiler_params=pltpu.CompilerParams(
                dimension_semantics=("parallel",),
                vmem_limit_bytes=vmem_limit),
            cost_estimate=pl.CostEstimate(
                flops=int(flops),
                transcendentals=int(transcendentals),
                bytes_accessed=int(bytes_accessed)),
        )(frames, self.basis, self.melT)

        # strip padding; return PyTorch layout (B, n_mel_channels, T_frames)
        mel = out[:self.n_filters, :total_rows]            # (40, B*T)
        mel = mel.reshape(self.n_filters, B, n_frames)
        return jnp.transpose(mel, (1, 0, 2))


# ------------------------------ references ------------------------------------

def _frame_reference(y, mod):
    """Straightforward reflect-pad + im2col framing (independent of the fused
    gather-index math used for the kernel path)."""
    pad = mod.filter_length // 2
    ypad = jnp.pad(y, ((0, 0), (pad, pad)), mode="reflect")
    n_frames = (ypad.shape[1] - mod.filter_length) // mod.hop_length + 1
    idx = (jnp.arange(n_frames)[:, None] * mod.hop_length
           + jnp.arange(mod.filter_length)[None, :])
    return ypad[:, idx], n_frames          # (B, n_frames, 401)


def _reference_bf16(y, mod):
    """Pure-JAX reference mirroring the kernel's bf16-operand / f32-accum math."""
    frames, _ = _frame_reference(y, mod)
    fr = frames.astype(jnp.bfloat16)
    br = mod._br_f32.astype(jnp.bfloat16)
    bi = mod._bi_f32.astype(jnp.bfloat16)
    melT = mod._melT_f32.astype(jnp.bfloat16)
    real = jnp.einsum("btw,wf->btf", fr, br, preferred_element_type=jnp.float32)
    imag = jnp.einsum("btw,wf->btf", fr, bi, preferred_element_type=jnp.float32)
    mag = jnp.sqrt(real * real + imag * imag)
    mel = jnp.einsum("btf,fm->btm", mag.astype(jnp.bfloat16), melT,
                     preferred_element_type=jnp.float32)
    return jnp.transpose(jnp.log(jnp.maximum(mel, 1e-5)), (0, 2, 1))


def _reference_f32(y, mod):
    """Full-precision reference of the module semantics."""
    frames, _ = _frame_reference(y, mod)
    real = jnp.einsum("btw,wf->btf", frames, mod._br_f32)
    imag = jnp.einsum("btw,wf->btf", frames, mod._bi_f32)
    mag = jnp.sqrt(real * real + imag * imag)
    mel = jnp.einsum("btf,fm->btm", mag, mod._melT_f32)
    return jnp.transpose(jnp.log(jnp.maximum(mel, 1e-5)), (0, 2, 1))


def _check(out, y, mod):
    ref16 = jax.block_until_ready(_reference_bf16(y, mod))
    assert np.allclose(np.asarray(out), np.asarray(ref16),
                       rtol=5e-3, atol=5e-3), \
        np.max(np.abs(np.asarray(out) - np.asarray(ref16)))
    ref32 = jax.block_until_ready(_reference_f32(y, mod))
    assert np.allclose(np.asarray(out), np.asarray(ref32),
                       rtol=1e-1, atol=1e-1), \
        np.max(np.abs(np.asarray(out) - np.asarray(ref32)))


if __name__ == "__main__":
    key = jax.random.PRNGKey(0)
    mod = MelFilterbanksPallas()

    # --- small input: single exact-fit tile path --------------------------
    B, num_samples = 2, 1600          # 0.1 s of 16 kHz audio, values in [-1, 1]
    y = jax.random.uniform(key, (B, num_samples), minval=-1.0, maxval=1.0,
                           dtype=jnp.float32)
    out = jax.block_until_ready(mod(y))
    # expected: (B, n_mel_channels=40, T_frames=(num_samples-1)//160 + 1 = 10)
    assert out.shape == (B, 40, 10), out.shape
    _check(out, y, mod)

    # --- longer input: multi-tile ("parallel" on v7x) + row-padding path ---
    k2 = jax.random.PRNGKey(1)
    y2 = jax.random.uniform(k2, (1, 24000), minval=-1.0, maxval=1.0,
                            dtype=jnp.float32)
    out2 = jax.block_until_ready(mod(y2))
    assert out2.shape == (1, 40, 150), out2.shape
    _check(out2, y2, mod)

    print("KERNEL_OK")
</pallas_src>

<mosaic_0001>
module attributes {stable_mosaic.version = 11 : i64} {
  func.func @_mel_fbank_kernel(%arg0: i32, %arg1: memref<24x401xbf16, #tpu.memory_space<vmem>>, %arg2: memref<401x512xbf16, #tpu.memory_space<vmem>>, %arg3: memref<256x128xbf16, #tpu.memory_space<vmem>>, %arg4: memref<128x24xf32, #tpu.memory_space<vmem>>) attributes {dimension_semantics = [#tpu.dimension_semantics<parallel>], iteration_bounds = array<i64: 1>, scalar_prefetch = 0 : i64, scratch_operands = 0 : i64, tpu.core_type = #tpu.core_type<tc>, window_params = [{transform_indices = @transform_0, window_bounds = array<i64: 24, 401>}, {pipeline_mode = #tpu.pipeline_mode<synchronous>, transform_indices = @transform_1, window_bounds = array<i64: 401, 512>}, {pipeline_mode = #tpu.pipeline_mode<synchronous>, transform_indices = @transform_2, window_bounds = array<i64: 256, 128>}, {transform_indices = @transform_3, window_bounds = array<i64: 128, 24>}]} {
    %c0 = arith.constant 0 : index
    %c0_0 = arith.constant 0 : index
    %0 = vector.load %arg1[%c0, %c0_0] : memref<24x401xbf16, #tpu.memory_space<vmem>>, vector<24x401xbf16>
    %c0_1 = arith.constant 0 : index
    %c0_2 = arith.constant 0 : index
    %1 = vector.load %arg2[%c0_1, %c0_2] : memref<401x512xbf16, #tpu.memory_space<vmem>>, vector<401x512xbf16>
    %cst = arith.constant dense<0.000000e+00> : vector<24x512xf32>
    %2 = tpu.matmul %0, %1, %cst {dimension_numbers = #tpu.dot_dimension_numbers<[1], [0], [0], [1], [0, 0, 1, 1], [], []>} : vector<24x401xbf16>, vector<401x512xbf16>, vector<24x512xf32> -> vector<24x512xf32>
    %3 = vector.extract_strided_slice %2 {offsets = [0, 0], sizes = [24, 256], strides = [1, 1]} : vector<24x512xf32> to vector<24x256xf32>
    %4 = vector.extract_strided_slice %2 {offsets = [0, 256], sizes = [24, 256], strides = [1, 1]} : vector<24x512xf32> to vector<24x256xf32>
    %5 = arith.mulf %3, %3 : vector<24x256xf32>
    %6 = arith.mulf %4, %4 : vector<24x256xf32>
    %7 = arith.addf %5, %6 : vector<24x256xf32>
    %8 = math.sqrt %7 : vector<24x256xf32>
    %9 = arith.truncf %8 : vector<24x256xf32> to vector<24x256xbf16>
    %c0_3 = arith.constant 0 : index
    %c0_4 = arith.constant 0 : index
    %10 = vector.load %arg3[%c0_3, %c0_4] : memref<256x128xbf16, #tpu.memory_space<vmem>>, vector<256x128xbf16>
    %cst_5 = arith.constant dense<0.000000e+00> : vector<24x128xf32>
    %11 = tpu.matmul %9, %10, %cst_5 {dimension_numbers = #tpu.dot_dimension_numbers<[1], [0], [0], [1], [0, 0, 1, 1], [], []>} : vector<24x256xbf16>, vector<256x128xbf16>, vector<24x128xf32> -> vector<24x128xf32>
    %cst_6 = arith.constant 9.99999974E-6 : f32
    %12 = vector.broadcast %cst_6 : f32 to vector<24x128xf32>
    %13 = arith.maximumf %11, %12 : vector<24x128xf32>
    %14 = math.log %13 : vector<24x128xf32>
    %15 = tpu.transpose %14, [1, 0] : vector<24x128xf32> -> vector<128x24xf32>
    %c0_7 = arith.constant 0 : index
    %c0_8 = arith.constant 0 : index
    %16 = vector.load %arg4[%c0_7, %c0_8] : memref<128x24xf32, #tpu.memory_space<vmem>>, vector<128x24xf32>
    tpu.vector_store %arg4[%c0_7, %c0_8], %15 {strides = array<i32>} : memref<128x24xf32, #tpu.memory_space<vmem>>, vector<128x24xf32>,
    return
  }
  func.func @transform_0(%arg0: i32) -> (i32, i32) {
    %c0_i32 = arith.constant 0 : i32
    %c0_i32_0 = arith.constant 0 : i32
    return %arg0, %c0_i32 : i32, i32
  }
  func.func @transform_1(%arg0: i32) -> (i32, i32) {
    %c0_i32 = arith.constant 0 : i32
    %c0_i32_0 = arith.constant 0 : i32
    %c0_i32_1 = arith.constant 0 : i32
    return %c0_i32, %c0_i32_0 : i32, i32
  }
  func.func @transform_2(%arg0: i32) -> (i32, i32) {
    %c0_i32 = arith.constant 0 : i32
    %c0_i32_0 = arith.constant 0 : i32
    %c0_i32_1 = arith.constant 0 : i32
    return %c0_i32, %c0_i32_0 : i32, i32
  }
  func.func @transform_3(%arg0: i32) -> (i32, i32) {
    %c0_i32 = arith.constant 0 : i32
    %c0_i32_0 = arith.constant 0 : i32
    return %c0_i32, %arg0 : i32, i32
  }
}

</mosaic_0001>

<llo_original>
// kernel: tpu_custom_call.1
$region0: #{tpu_custom_call.1}
  #allocation0 [shape = 'u32[]', space=smem, size = 0x4, offset = 0x4, fixed_abs, tag = 'smem constant byte address 0x4 - core index']
  #allocation1 [shape = 'u32[144,128]{1,0:T(1,128)}', space=vmem, size = 0x12000, scoped, tag = 'internal scratch']
  %s0 = inlined_call_operand.hbm [shape: bf16[24,401], index: 0, kind: input, shape index: {}]
  %s1 = inlined_call_operand.hbm [shape: bf16[401,512], index: 1, kind: input, shape index: {}]
  %s2 = inlined_call_operand.hbm [shape: bf16[256,128], index: 2, kind: input, shape index: {}]
  %s3 = inlined_call_operand.vmem [shape: f32[128,24], index: 3, kind: output, shape index: {}]
  %s4 = sld [smem:[#allocation0]]
  $region34: #{tpu_custom_call.1} parent=0
    _
  %s6 = ssub.s32 1, %s4
  %s7 = scalar_select 0, %s6, %s4
  $region1: #{tpu_custom_call.1} parent=0
    #allocation2 [shape = 'u8[24576]{0}', space=vmem, size = 0x6000, scoped, tag = 'input window, operand 0, single buffered']
    #allocation3 [shape = 's32[1]{0}', space=sflag, size = 0x4, scoped, tag = 'scoped memory for tpu_custom_call.1']
    #allocation4 [shape = 'u8[417792]{0}', space=vmem, size = 0x66000, scoped, tag = 'input window, operand 1, single buffered']
    #allocation5 [shape = 's32[1]{0}', space=sflag, size = 0x4, scoped, tag = 'scoped memory for tpu_custom_call.1']
    #allocation6 [shape = 'u8[65536]{0}', space=vmem, size = 0x10000, scoped, tag = 'input window, operand 2, single buffered']
    %8 = vsyncpa [#allocation3], 0
    %9 = vsyncpa [#allocation5], 0
    // Predicated region
    $region2: #{tpu_custom_call.1} parent=1 // pred_check
      _
    $region3: #{tpu_custom_call.1} parent=1 // pred_check_branch
      %11 = sbr.rel (0) target = $region5
    $region4: #{tpu_custom_call.1} parent=1 // pred_region
      %s13 = ssub.s32 768, 768
      %14 = vsyncadd [#allocation3], %s13
      %s15 = sshll.u32 [#allocation2], 4
      %s16 = int_to_ptr.vmem [resolvable:$true] %s15
      %21 = dma.hbm_to_vmem [thread:$0]  %s0, 768, %s16, [#allocation3], 256, 256, 16
    $region5: #{tpu_custom_call.1} parent=1 // pred_fallthru
      _
    // Predicated region
    $region6: #{tpu_custom_call.1} parent=1 // pred_check
      _
    $region7: #{tpu_custom_call.1} parent=1 // pred_check_branch
      %23 = sbr.rel (0) target = $region9
    $region8: #{tpu_custom_call.1} parent=1 // pred_region
      %s25 = ssub.s32 13056, 13056
      %26 = vsyncadd [#allocation5], %s25
      %s27 = sshll.u32 [#allocation4], 4
      %s28 = int_to_ptr.vmem [resolvable:$true] %s27
      %33 = dma.hbm_to_vmem [thread:$0]  %s1, 13056, %s28, [#allocation5], 256, 256, 16
    $region9: #{tpu_custom_call.1} parent=1 // pred_fallthru
      _
    // Predicated region
    $region10: #{tpu_custom_call.1} parent=1 // pred_check
      _
    $region11: #{tpu_custom_call.1} parent=1 // pred_check_branch
      %35 = sbr.rel (0) target = $region13
    $region12: #{tpu_custom_call.1} parent=1 // pred_region
      %s37 = ssub.s32 2048, 2048
      %38 = vsyncadd [#allocation5], %s37
      %s39 = sshll.u32 [#allocation6], 4
      %s40 = int_to_ptr.vmem [resolvable:$true] %s39
      %45 = dma.hbm_to_vmem [thread:$0]  %s2, 2048, %s40, [#allocation5], 64, 64, 4
    $region13: #{tpu_custom_call.1} parent=1 // pred_fallthru
      _
    // Predicated region
    $region14: #{tpu_custom_call.1} parent=1 // pred_check
      _
    $region15: #{tpu_custom_call.1} parent=1 // pred_check_branch
      %47 = sbr.rel (0) target = $region17
    $region16: #{tpu_custom_call.1} parent=1 // pred_region
      %48 = dma.done [#allocation3], 768
    $region17: #{tpu_custom_call.1} parent=1 // pred_fallthru
      _
    // Predicated region
    $region18: #{tpu_custom_call.1} parent=1 // pred_check
      _
    $region19: #{tpu_custom_call.1} parent=1 // pred_check_branch
      %50 = sbr.rel (0) target = $region21
    $region20: #{tpu_custom_call.1} parent=1 // pred_region
      %51 = dma.done [#allocation5], 13056
    $region21: #{tpu_custom_call.1} parent=1 // pred_fallthru
      _
    // Predicated region
    $region22: #{tpu_custom_call.1} parent=1 // pred_check
      _
    $region23: #{tpu_custom_call.1} parent=1 // pred_check_branch
      %53 = sbr.rel (0) target = $region25
    $region24: #{tpu_custom_call.1} parent=1 // pred_region
      %54 = dma.done [#allocation5], 2048
    $region25: #{tpu_custom_call.1} parent=1 // pred_fallthru
      _
    %v56 = vld [vmem:[#allocation2] sm:$0xff]
    %v57 = vld [vmem:[#allocation2 + $0x8] sm:$0xff]
    %v58 = vld [vmem:[#allocation2 + $0x10] sm:$0xff]
    %v59 = vld [vmem:[#allocation2 + $0x18] sm:$0xff]
    %v60 = vld [vmem:[#allocation2 + $0x20] sm:$0xff]
    %v61 = vld [vmem:[#allocation2 + $0x28] sm:$0xff]
    %v62 = vld [vmem:[#allocation4] sm:$0xff]
    %v63 = vld [vmem:[#allocation4 + $0x8] sm:$0xff]
    %v64 = vld [vmem:[#allocation4 + $0x10] sm:$0xff]
    %v65 = vld [vmem:[#allocation4 + $0x18] sm:$0xff]
    %v66 = vld [vmem:[#allocation4 + $0x20] sm:$0xff]
    %v67 = vld [vmem:[#allocation4 + $0x28] sm:$0xff]
    %v68 = vld [vmem:[#allocation4 + $0x30] sm:$0xff]
    %v69 = vld [vmem:[#allocation4 + $0x38] sm:$0xff]
    %v70 = vld [vmem:[#allocation4 + $0x40] sm:$0xff]
    %v71 = vld [vmem:[#allocation4 + $0x48] sm:$0xff]
    %v72 = vld [vmem:[#allocation4 + $0x50] sm:$0xff]
    %v73 = vld [vmem:[#allocation4 + $0x58] sm:$0xff]
    %v74 = vld [vmem:[#allocation4 + $0x60] sm:$0xff]
    %v75 = vld [vmem:[#allocation4 + $0x68] sm:$0xff]
    %v76 = vld [vmem:[#allocation4 + $0x70] sm:$0xff]
    %v77 = vld [vmem:[#allocation4 + $0x78] sm:$0xff]
    %v78 = vld [vmem:[#allocation4 + $0x80] sm:$0xff]
    %v79 = vld [vmem:[#allocation4 + $0x88] sm:$0xff]
    %v80 = vld [vmem:[#allocation4 + $0x90] sm:$0xff]
    %v81 = vld [vmem:[#allocation4 + $0x98] sm:$0xff]
    %v82 = vld [vmem:[#allocation4 + $0xa0] sm:$0xff]
    %v83 = vld [vmem:[#allocation4 + $0xa8] sm:$0xff]
    %v84 = vld [vmem:[#allocation4 + $0xb0] sm:$0xff]
    %v85 = vld [vmem:[#allocation4 + $0xb8] sm:$0xff]
    %v86 = vld [vmem:[#allocation4 + $0xc0] sm:$0xff]
    %v87 = vld [vmem:[#allocation4 + $0xc8] sm:$0xff]
    %v88 = vld [vmem:[#allocation4 + $0xd0] sm:$0xff]
    %v89 = vld [vmem:[#allocation4 + $0xd8] sm:$0xff]
    %v90 = vld [vmem:[#allocation4 + $0xe0] sm:$0xff]
    %v91 = vld [vmem:[#allocation4 + $0xe8] sm:$0xff]
    %v92 = vld [vmem:[#allocation4 + $0xf0] sm:$0xff]
    %v93 = vld [vmem:[#allocation4 + $0xf8] sm:$0xff]
    %v94 = vld [vmem:[#allocation4 + $0x100] sm:$0xff]
    %v95 = vld [vmem:[#allocation4 + $0x108] sm:$0xff]
    %v96 = vld [vmem:[#allocation4 + $0x110] sm:$0xff]
    %v97 = vld [vmem:[#allocation4 + $0x118] sm:$0xff]
    %v98 = vld [vmem:[#allocation4 + $0x120] sm:$0xff]
    %v99 = vld [vmem:[#allocation4 + $0x128] sm:$0xff]
    %v100 = vld [vmem:[#allocation4 + $0x130] sm:$0xff]
    %v101 = vld [vmem:[#allocation4 + $0x138] sm:$0xff]
    %v102 = vld [vmem:[#allocation4 + $0x140] sm:$0xff]
    %v103 = vld [vmem:[#allocation4 + $0x148] sm:$0xff]
    %v104 = vld [vmem:[#allocation4 + $0x150] sm:$0xff]
    %v105 = vld [vmem:[#allocation4 + $0x158] sm:$0xff]
    %v106 = vld [vmem:[#allocation4 + $0x160] sm:$0xff]
    %v107 = vld [vmem:[#allocation4 + $0x168] sm:$0xff]
    %v108 = vld [vmem:[#allocation4 + $0x170] sm:$0xff]
    %v109 = vld [vmem:[#allocation4 + $0x178] sm:$0xff]
    %v110 = vld [vmem:[#allocation4 + $0x180] sm:$0xff]
    %v111 = vld [vmem:[#allocation4 + $0x188] sm:$0xff]
    %v112 = vld [vmem:[#allocation4 + $0x190] sm:$0xff]
    %v113 = vld [vmem:[#allocation4 + $0x198] sm:$0xff]
    %v114 = vld [vmem:[#allocation4 + $0x1a0] sm:$0xff]
    %v115 = vld [vmem:[#allocation4 + $0x1a8] sm:$0xff]
    %v116 = vld [vmem:[#allocation4 + $0x1b0] sm:$0xff]
    %v117 = vld [vmem:[#allocation4 + $0x1b8] sm:$0xff]
    %v118 = vld [vmem:[#allocation4 + $0x1c0] sm:$0xff]
    %v119 = vld [vmem:[#allocation4 + $0x1c8] sm:$0xff]
    %v120 = vld [vmem:[#allocation4 + $0x1d0] sm:$0xff]
    %v121 = vld [vmem:[#allocation4 + $0x1d8] sm:$0xff]
    %v122 = vld [vmem:[#allocation4 + $0x1e0] sm:$0xff]
    %v123 = vld [vmem:[#allocation4 + $0x1e8] sm:$0xff]
    %v124 = vld [vmem:[#allocation4 + $0x1f0] sm:$0xff]
    %v125 = vld [vmem:[#allocation4 + $0x1f8] sm:$0xff]
    %v126 = vld [vmem:[#allocation4 + $0x200] sm:$0xff]
    %v127 = vld [vmem:[#allocation4 + $0x208] sm:$0xff]
    %v128 = vld [vmem:[#allocation4 + $0x210] sm:$0xff]
    %v129 = vld [vmem:[#allocation4 + $0x218] sm:$0xff]
    %v130 = vld [vmem:[#allocation4 + $0x220] sm:$0xff]
    %v131 = vld [vmem:[#allocation4 + $0x228] sm:$0xff]
    %v132 = vld [vmem:[#allocation4 + $0x230] sm:$0xff]
    %v133 = vld [vmem:[#allocation4 + $0x238] sm:$0xff]
    %v134 = vld [vmem:[#allocation4 + $0x240] sm:$0xff]
    %v135 = vld [vmem:[#allocation4 + $0x248] sm:$0xff]
    %v136 = vld [vmem:[#allocation4 + $0x250] sm:$0xff]
    %v137 = vld [vmem:[#allocation4 + $0x258] sm:$0xff]
    %v138 = vld [vmem:[#allocation4 + $0x260] sm:$0xff]
    %v139 = vld [vmem:[#allocation4 + $0x268] sm:$0xff]
    %v140 = vld [vmem:[#allocation4 + $0x270] sm:$0xff]
    %v141 = vld [vmem:[#allocation4 + $0x278] sm:$0xff]
    %v142 = vld [vmem:[#allocation4 + $0x280] sm:$0xff]
    %v143 = vld [vmem:[#allocation4 + $0x288] sm:$0xff]
    %v144 = vld [vmem:[#allocation4 + $0x290] sm:$0xff]
    %v145 = vld [vmem:[#allocation4 + $0x298] sm:$0xff]
    %v146 = vld [vmem:[#allocation4 + $0x2a0] sm:$0xff]
    %v147 = vld [vmem:[#allocation4 + $0x2a8] sm:$0xff]
    %v148 = vld [vmem:[#allocation4 + $0x2b0] sm:$0xff]
    %v149 = vld [vmem:[#allocation4 + $0x2b8] sm:$0xff]
    %v150 = vld [vmem:[#allocation4 + $0x2c0] sm:$0xff]
    %v151 = vld [vmem:[#allocation4 + $0x2c8] sm:$0xff]
    %v152 = vld [vmem:[#allocation4 + $0x2d0] sm:$0xff]
    %v153 = vld [vmem:[#allocation4 + $0x2d8] sm:$0xff]
    %v154 = vld [vmem:[#allocation4 + $0x2e0] sm:$0xff]
    %v155 = vld [vmem:[#allocation4 + $0x2e8] sm:$0xff]
    %v156 = vld [vmem:[#allocation4 + $0x2f0] sm:$0xff]
    %v157 = vld [vmem:[#allocation4 + $0x2f8] sm:$0xff]
    %v158 = vld [vmem:[#allocation4 + $0x300] sm:$0xff]
    %v159 = vld [vmem:[#allocation4 + $0x308] sm:$0xff]
    %v160 = vld [vmem:[#allocation4 + $0x310] sm:$0xff]
    %v161 = vld [vmem:[#allocation4 + $0x318] sm:$0xff]
    %v162 = vld [vmem:[#allocation4 + $0x320] sm:$0x11]
    %v163 = vld [vmem:[#allocation4 + $0x328] sm:$0x11]
    %v170 = vunpack.c.l.b16 %v56
    %v171 = vunpack.c.h.b16 %v56
    %v172 = vunpack.c.l.b16 %v57
    %v173 = vunpack.c.h.b16 %v57
    %v174 = vunpack.c.l.b16 %v58
    %v175 = vunpack.c.h.b16 %v58
    %v176 = vunpack.c.l.b16 %v59
    %v177 = vunpack.c.h.b16 %v59
    %v178 = vunpack.c.l.b16 %v60
    %v179 = vunpack.c.h.b16 %v60
    %v180 = vunpack.c.l.b16 %v61
    %v181 = vunpack.c.h.b16 %v61
    %v182 = vpack.c.b16 %v174, %v170
    %v183 = vpack.c.b16 %v175, %v171
    %v184 = vpack.c.b16 %v176, %v172
    %v185 = vpack.c.b16 %v177, %v173
    %v186 = vpack.c.b16 %v178, %v178
    %v187 = vpack.c.b16 %v179, %v179
    %v188 = vpack.c.b16 %v180, %v180
    %v189 = vpack.c.b16 %v181, %v181
    %v298 = vunpack.c.l.b16 %v62
    %v299 = vunpack.c.h.b16 %v62
    %v300 = vunpack.c.l.b16 %v63
    %v301 = vunpack.c.h.b16 %v63
    %v302 = vunpack.c.l.b16 %v64
    %v303 = vunpack.c.h.b16 %v64
    %v304 = vunpack.c.l.b16 %v65
    %v305 = vunpack.c.h.b16 %v65
    %v306 = vunpack.c.l.b16 %v66
    %v307 = vunpack.c.h.b16 %v66
    %v308 = vunpack.c.l.b16 %v67
    %v309 = vunpack.c.h.b16 %v67
    %v310 = vunpack.c.l.b16 %v68
    %v311 = vunpack.c.h.b16 %v68
    %v312 = vunpack.c.l.b16 %v69
    %v313 = vunpack.c.h.b16 %v69
    %v314 = vunpack.c.l.b16 %v70
    %v315 = vunpack.c.h.b16 %v70
    %v316 = vunpack.c.l.b16 %v71
    %v317 = vunpack.c.h.b16 %v71
    %v318 = vunpack.c.l.b16 %v72
    %v319 = vunpack.c.h.b16 %v72
    %v320 = vunpack.c.l.b16 %v73
    %v321 = vunpack.c.h.b16 %v73
    %v322 = vunpack.c.l.b16 %v74
    %v323 = vunpack.c.h.b16 %v74
    %v324 = vunpack.c.l.b16 %v75
    %v325 = vunpack.c.h.b16 %v75
    %v326 = vunpack.c.l.b16 %v76
    %v327 = vunpack.c.h.b16 %v76
    %v328 = vunpack.c.l.b16 %v77
    %v329 = vunpack.c.h.b16 %v77
    %v330 = vunpack.c.l.b16 %v78
    %v331 = vunpack.c.h.b16 %v78
    %v332 = vunpack.c.l.b16 %v79
    %v333 = vunpack.c.h.b16 %v79
    %v334 = vunpack.c.l.b16 %v80
    %v335 = vunpack.c.h.b16 %v80
    %v336 = vunpack.c.l.b16 %v81
    %v337 = vunpack.c.h.b16 %v81
    %v338 = vunpack.c.l.b16 %v82
    %v339 = vunpack.c.h.b16 %v82
    %v340 = vunpack.c.l.b16 %v83
    %v341 = vunpack.c.h.b16 %v83
    %v342 = vunpack.c.l.b16 %v84
    %v343 = vunpack.c.h.b16 %v84
    %v344 = vunpack.c.l.b16 %v85
    %v345 = vunpack.c.h.b16 %v85
    %v346 = vunpack.c.l.b16 %v86
    %v347 = vunpack.c.h.b16 %v86
    %v348 = vunpack.c.l.b16 %v87
    %v349 = vunpack.c.h.b16 %v87
    %v350 = vunpack.c.l.b16 %v88
    %v351 = vunpack.c.h.b16 %v88
    %v352 = vunpack.c.l.b16 %v89
    %v353 = vunpack.c.h.b16 %v89
    %v354 = vunpack.c.l.b16 %v90
    %v355 = vunpack.c.h.b16 %v90
    %v356 = vunpack.c.l.b16 %v91
    %v357 = vunpack.c.h.b16 %v91
    %v358 = vunpack.c.l.b16 %v92
    %v359 = vunpack.c.h.b16 %v92
    %v360 = vunpack.c.l.b16 %v93
    %v361 = vunpack.c.h.b16 %v93
    %v362 = vunpack.c.l.b16 %v94
    %v363 = vunpack.c.h.b16 %v94
    %v364 = vunpack.c.l.b16 %v95
    %v365 = vunpack.c.h.b16 %v95
    %v366 = vunpack.c.l.b16 %v96
    %v367 = vunpack.c.h.b16 %v96
    %v368 = vunpack.c.l.b16 %v97
    %v369 = vunpack.c.h.b16 %v97
    %v370 = vunpack.c.l.b16 %v98
    %v371 = vunpack.c.h.b16 %v98
    %v372 = vunpack.c.l.b16 %v99
    %v373 = vunpack.c.h.b16 %v99
    %v374 = vunpack.c.l.b16 %v100
    %v375 = vunpack.c.h.b16 %v100
    %v376 = vunpack.c.l.b16 %v101
    %v377 = vunpack.c.h.b16 %v101
    %v378 = vunpack.c.l.b16 %v102
    %v379 = vunpack.c.h.b16 %v102
    %v380 = vunpack.c.l.b16 %v103
    %v381 = vunpack.c.h.b16 %v103
    %v382 = vunpack.c.l.b16 %v104
    %v383 = vunpack.c.h.b16 %v104
    %v384 = vunpack.c.l.b16 %v105
    %v385 = vunpack.c.h.b16 %v105
    %v386 = vunpack.c.l.b16 %v106
    %v387 = vunpack.c.h.b16 %v106
    %v388 = vunpack.c.l.b16 %v107
    %v389 = vunpack.c.h.b16 %v107
    %v390 = vunpack.c.l.b16 %v108
    %v391 = vunpack.c.h.b16 %v108
    %v392 = vunpack.c.l.b16 %v109
    %v393 = vunpack.c.h.b16 %v109
    %v394 = vunpack.c.l.b16 %v110
    %v395 = vunpack.c.h.b16 %v110
    %v396 = vunpack.c.l.b16 %v111
    %v397 = vunpack.c.h.b16 %v111
    %v398 = vunpack.c.l.b16 %v112
    %v399 = vunpack.c.h.b16 %v112
    %v400 = vunpack.c.l.b16 %v113
    %v401 = vunpack.c.h.b16 %v113
    %v402 = vunpack.c.l.b16 %v114
    %v403 = vunpack.c.h.b16 %v114
    %v404 = vunpack.c.l.b16 %v115
    %v405 = vunpack.c.h.b16 %v115
    %v406 = vunpack.c.l.b16 %v116
    %v407 = vunpack.c.h.b16 %v116
    %v408 = vunpack.c.l.b16 %v117
    %v409 = vunpack.c.h.b16 %v117
    %v410 = vunpack.c.l.b16 %v118
    %v411 = vunpack.c.h.b16 %v118
    %v412 = vunpack.c.l.b16 %v119
    %v413 = vunpack.c.h.b16 %v119
    %v414 = vunpack.c.l.b16 %v120
    %v415 = vunpack.c.h.b16 %v120
    %v416 = vunpack.c.l.b16 %v121
    %v417 = vunpack.c.h.b16 %v121
    %v418 = vunpack.c.l.b16 %v122
    %v419 = vunpack.c.h.b16 %v122
    %v420 = vunpack.c.l.b16 %v123
    %v421 = vunpack.c.h.b16 %v123
    %v422 = vunpack.c.l.b16 %v124
    %v423 = vunpack.c.h.b16 %v124
    %v424 = vunpack.c.l.b16 %v125
    %v425 = vunpack.c.h.b16 %v125
    %v426 = vunpack.c.l.b16 %v126
    %v427 = vunpack.c.h.b16 %v126
    %v428 = vunpack.c.l.b16 %v127
    %v429 = vunpack.c.h.b16 %v127
    %v430 = vunpack.c.l.b16 %v128
    %v431 = vunpack.c.h.b16 %v128
    %v432 = vunpack.c.l.b16 %v129
    %v433 = vunpack.c.h.b16 %v129
    %v434 = vunpack.c.l.b16 %v130
    %v435 = vunpack.c.h.b16 %v130
    %v436 = vunpack.c.l.b16 %v131
    %v437 = vunpack.c.h.b16 %v131
    %v438 = vunpack.c.l.b16 %v132
    %v439 = vunpack.c.h.b16 %v132
    %v440 = vunpack.c.l.b16 %v133
    %v441 = vunpack.c.h.b16 %v133
    %v442 = vunpack.c.l.b16 %v134
    %v443 = vunpack.c.h.b16 %v134
    %v444 = vunpack.c.l.b16 %v135
    %v445 = vunpack.c.h.b16 %v135
    %v446 = vunpack.c.l.b16 %v136
    %v447 = vunpack.c.h.b16 %v136
    %v448 = vunpack.c.l.b16 %v137
    %v449 = vunpack.c.h.b16 %v137
    %v450 = vunpack.c.l.b16 %v138
    %v451 = vunpack.c.h.b16 %v138
    %v452 = vunpack.c.l.b16 %v139
    %v453 = vunpack.c.h.b16 %v139
    %v454 = vunpack.c.l.b16 %v140
    %v455 = vunpack.c.h.b16 %v140
    %v456 = vunpack.c.l.b16 %v141
    %v457 = vunpack.c.h.b16 %v141
    %v458 = vunpack.c.l.b16 %v142
    %v459 = vunpack.c.h.b16 %v142
    %v460 = vunpack.c.l.b16 %v143
    %v461 = vunpack.c.h.b16 %v143
    %v462 = vunpack.c.l.b16 %v144
    %v463 = vunpack.c.h.b16 %v144
    %v464 = vunpack.c.l.b16 %v145
    %v465 = vunpack.c.h.b16 %v145
    %v466 = vunpack.c.l.b16 %v146
    %v467 = vunpack.c.h.b16 %v146
    %v468 = vunpack.c.l.b16 %v147
    %v469 = vunpack.c.h.b16 %v147
    %v470 = vunpack.c.l.b16 %v148
    %v471 = vunpack.c.h.b16 %v148
    %v472 = vunpack.c.l.b16 %v149
    %v473 = vunpack.c.h.b16 %v149
    %v474 = vunpack.c.l.b16 %v150
    %v475 = vunpack.c.h.b16 %v150
    %v476 = vunpack.c.l.b16 %v151
    %v477 = vunpack.c.h.b16 %v151
    %v478 = vunpack.c.l.b16 %v152
    %v479 = vunpack.c.h.b16 %v152
    %v480 = vunpack.c.l.b16 %v153
    %v481 = vunpack.c.h.b16 %v153
    %v482 = vunpack.c.l.b16 %v154
    %v483 = vunpack.c.h.b16 %v154
    %v484 = vunpack.c.l.b16 %v155
    %v485 = vunpack.c.h.b16 %v155
    %v486 = vunpack.c.l.b16 %v156
    %v487 = vunpack.c.h.b16 %v156
    %v488 = vunpack.c.l.b16 %v157
    %v489 = vunpack.c.h.b16 %v157
    %v490 = vunpack.c.l.b16 %v158
    %v491 = vunpack.c.h.b16 %v158
    %v492 = vunpack.c.l.b16 %v159
    %v493 = vunpack.c.h.b16 %v159
    %v494 = vunpack.c.l.b16 %v160
    %v495 = vunpack.c.h.b16 %v160
    %v496 = vunpack.c.l.b16 %v161
    %v497 = vunpack.c.h.b16 %v161
    %v498 = vunpack.c.l.b16 %v162
    %v499 = vunpack.c.h.b16 %v162
    %v500 = vunpack.c.l.b16 %v163
    %v501 = vunpack.c.h.b16 %v163
    %v502 = vpack.c.b16 %v302, %v298
    %v503 = vpack.c.b16 %v303, %v299
    %v504 = vpack.c.b16 %v304, %v300
    %v505 = vpack.c.b16 %v305, %v301
    %v506 = vpack.c.b16 %v310, %v306
    %v507 = vpack.c.b16 %v311, %v307
    %v508 = vpack.c.b16 %v312, %v308
    %v509 = vpack.c.b16 %v313, %v309
    %v510 = vpack.c.b16 %v318, %v314
    %v511 = vpack.c.b16 %v319, %v315
    %v512 = vpack.c.b16 %v320, %v316
    %v513 = vpack.c.b16 %v321, %v317
    %v514 = vpack.c.b16 %v326, %v322
    %v515 = vpack.c.b16 %v327, %v323
    %v516 = vpack.c.b16 %v328, %v324
    %v517 = vpack.c.b16 %v329, %v325
    %v518 = vpack.c.b16 %v334, %v330
    %v519 = vpack.c.b16 %v335, %v331
    %v520 = vpack.c.b16 %v336, %v332
    %v521 = vpack.c.b16 %v337, %v333
    %v522 = vpack.c.b16 %v342, %v338
    %v523 = vpack.c.b16 %v343, %v339
    %v524 = vpack.c.b16 %v344, %v340
    %v525 = vpack.c.b16 %v345, %v341
    %v526 = vpack.c.b16 %v350, %v346
    %v527 = vpack.c.b16 %v351, %v347
    %v528 = vpack.c.b16 %v352, %v348
    %v529 = vpack.c.b16 %v353, %v349
    %v530 = vpack.c.b16 %v358, %v354
    %v531 = vpack.c.b16 %v359, %v355
    %v532 = vpack.c.b16 %v360, %v356
    %v533 = vpack.c.b16 %v361, %v357
    %v534 = vpack.c.b16 %v366, %v362
    %v535 = vpack.c.b16 %v367, %v363
    %v536 = vpack.c.b16 %v368, %v364
    %v537 = vpack.c.b16 %v369, %v365
    %v538 = vpack.c.b16 %v374, %v370
    %v539 = vpack.c.b16 %v375, %v371
    %v540 = vpack.c.b16 %v376, %v372
    %v541 = vpack.c.b16 %v377, %v373
    %v542 = vpack.c.b16 %v382, %v378
    %v543 = vpack.c.b16 %v383, %v379
    %v544 = vpack.c.b16 %v384, %v380
    %v545 = vpack.c.b16 %v385, %v381
    %v546 = vpack.c.b16 %v390, %v386
    %v547 = vpack.c.b16 %v391, %v387
    %v548 = vpack.c.b16 %v392, %v388
    %v549 = vpack.c.b16 %v393, %v389
    %v550 = vpack.c.b16 %v398, %v394
    %v551 = vpack.c.b16 %v399, %v395
    %v552 = vpack.c.b16 %v400, %v396
    %v553 = vpack.c.b16 %v401, %v397
    %v554 = vpack.c.b16 %v406, %v402
    %v555 = vpack.c.b16 %v407, %v403
    %v556 = vpack.c.b16 %v408, %v404
    %v557 = vpack.c.b16 %v409, %v405
    %v558 = vpack.c.b16 %v414, %v410
    %v559 = vpack.c.b16 %v415, %v411
    %v560 = vpack.c.b16 %v416, %v412
    %v561 = vpack.c.b16 %v417, %v413
    %v562 = vpack.c.b16 %v422, %v418
    %v563 = vpack.c.b16 %v423, %v419
    %v564 = vpack.c.b16 %v424, %v420
    %v565 = vpack.c.b16 %v425, %v421
    %v566 = vpack.c.b16 %v430, %v426
    %v567 = vpack.c.b16 %v431, %v427
    %v568 = vpack.c.b16 %v432, %v428
    %v569 = vpack.c.b16 %v433, %v429
    %v570 = vpack.c.b16 %v438, %v434
    %v571 = vpack.c.b16 %v439, %v435
    %v572 = vpack.c.b16 %v440, %v436
    %v573 = vpack.c.b16 %v441, %v437
    %v574 = vpack.c.b16 %v446, %v442
    %v575 = vpack.c.b16 %v447, %v443
    %v576 = vpack.c.b16 %v448, %v444
    %v577 = vpack.c.b16 %v449, %v445
    %v578 = vpack.c.b16 %v454, %v450
    %v579 = vpack.c.b16 %v455, %v451
    %v580 = vpack.c.b16 %v456, %v452
    %v581 = vpack.c.b16 %v457, %v453
    %v582 = vpack.c.b16 %v462, %v458
    %v583 = vpack.c.b16 %v463, %v459
    %v584 = vpack.c.b16 %v464, %v460
    %v585 = vpack.c.b16 %v465, %v461
    %v586 = vpack.c.b16 %v470, %v466
    %v587 = vpack.c.b16 %v471, %v467
    %v588 = vpack.c.b16 %v472, %v468
    %v589 = vpack.c.b16 %v473, %v469
    %v590 = vpack.c.b16 %v478, %v474
    %v591 = vpack.c.b16 %v479, %v475
    %v592 = vpack.c.b16 %v480, %v476
    %v593 = vpack.c.b16 %v481, %v477
    %v594 = vpack.c.b16 %v486, %v482
    %v595 = vpack.c.b16 %v487, %v483
    %v596 = vpack.c.b16 %v488, %v484
    %v597 = vpack.c.b16 %v489, %v485
    %v598 = vpack.c.b16 %v494, %v490
    %v599 = vpack.c.b16 %v495, %v491
    %v600 = vpack.c.b16 %v496, %v492
    %v601 = vpack.c.b16 %v497, %v493
    %v602 = vpack.c.b16 %v498, %v498
    %v603 = vpack.c.b16 %v499, %v499
    %v604 = vpack.c.b16 %v500, %v500
    %v605 = vpack.c.b16 %v501, %v501
    %vm706 = vcmask 138240
    %v708 = vsel %vm706, %v185, 0
    %v711 = vsel %vm706, %v189, 0
    %vm713 = vcmask 1040384
    %v714 = vsel 0, 4294967295, 65535
    %v715 = vsel %vm713, %v714, 0
    %v717 = vand.u32 %v602, %v715
    %v720 = vand.u32 %v603, %v715
    %v723 = vand.u32 %v604, %v715
    %v726 = vand.u32 %v605, %v715
    %728 = vmatprep.subr.bf16.mxu0 %v503
    %729 = vmatpush1.bf16.msra.mxu0 %v502
    %730 = vmatprep.subr.bf16.mxu0 %v507
    %731 = vmatpush1.bf16.msra.mxu0 %v506
    %732 = vmatprep.subr.bf16.mxu0 %v511
    %733 = vmatpush1.bf16.msra.mxu0 %v510
    %734 = vmatprep.subr.bf16.mxu0 %v515
    %735 = vmatpush1.bf16.msra.mxu0 %v514
    %736 = vmatprep.subr.bf16.mxu0 %v519
    %737 = vmatpush1.bf16.msra.mxu0 %v518
    %738 = vmatprep.subr.bf16.mxu0 %v523
    %739 = vmatpush1.bf16.msra.mxu0 %v522
    %740 = vmatprep.subr.bf16.mxu0 %v527
    %741 = vmatpush1.bf16.msra.mxu0 %v526
    %742 = vmatprep.subr.bf16.mxu0 %v531
    %743 = vmatpush1.bf16.msra.mxu0 %v530
    %744 = vmatprep.subr.bf16.mxu0 %v535
    %745 = vmatpush1.bf16.msra.mxu0 %v534
    %746 = vmatprep.subr.bf16.mxu0 %v539
    %747 = vmatpush1.bf16.msra.mxu0 %v538
    %748 = vmatprep.subr.bf16.mxu0 %v543
    %749 = vmatpush1.bf16.msra.mxu0 %v542
    %750 = vmatprep.subr.bf16.mxu0 %v547
    %751 = vmatpush1.bf16.msra.mxu0 %v546
    %752 = vmatprep.subr.bf16.mxu0 %v551
    %753 = vmatpush1.bf16.msra.mxu0 %v550
    %754 = vmatprep.subr.bf16.mxu0 %v555
    %755 = vmatpush1.bf16.msra.mxu0 %v554
    %756 = vmatprep.subr.bf16.mxu0 %v559
    %757 = vmatpush1.bf16.msra.mxu0 %v558
    %758 = vmatprep.subr.bf16.mxu0 %v563
    %759 = vmatpush1.bf16.msra.mxu0 %v562
    %760 = vmatprep.mubr.bf16.mxu0 %v183
    %761 = vmatmul.mubr.bf16.gmra.mrb[0].mxu0 %v182
    %v762 = vpop.f32.mrb[0].mxu0
    %v763 = vadd.f32 0.0, %v762
    %v764 = vpop.f32.mrb[0].mxu0
    %v765 = vadd.f32 0.0, %v764
    %v766 = vpop.f32.mrb[0].mxu0
    %v767 = vadd.f32 0.0, %v766
    %v768 = vpop.f32.mrb[0].mxu0
    %v769 = vadd.f32 0.0, %v768
    %770 = vmatprep.mubr.bf16.mxu0 %v187
    %771 = vmatmul.mubr.bf16.gmra.mrb[0].mxu0 %v186
    %v772 = vpop.f32.mrb[0].mxu0
    %v773 = vadd.f32 0.0, %v772
    %v774 = vpop.f32.mrb[0].mxu0
    %v775 = vadd.f32 0.0, %v774
    %v776 = vpop.f32.mrb[0].mxu0
    %v777 = vpop.f32.mrb[0].mxu0
    %778 = vdwg.mxu0
    %779 = vmatprep.subr.bf16.mxu0 %v567
    %780 = vmatpush1.bf16.msra.mxu0 %v566
    %781 = vmatprep.subr.bf16.mxu0 %v571
    %782 = vmatpush1.bf16.msra.mxu0 %v570
    %783 = vmatprep.subr.bf16.mxu0 %v575
    %784 = vmatpush1.bf16.msra.mxu0 %v574
    %785 = vmatprep.subr.bf16.mxu0 %v579
    %786 = vmatpush1.bf16.msra.mxu0 %v578
    %787 = vmatprep.subr.bf16.mxu0 %v583
    %788 = vmatpush1.bf16.msra.mxu0 %v582
    %789 = vmatprep.subr.bf16.mxu0 %v587
    %790 = vmatpush1.bf16.msra.mxu0 %v586
    %791 = vmatprep.subr.bf16.mxu0 %v591
    %792 = vmatpush1.bf16.msra.mxu0 %v590
    %793 = vmatprep.subr.bf16.mxu0 %v595
    %794 = vmatpush1.bf16.msra.mxu0 %v594
    %795 = vmatprep.subr.bf16.mxu0 %v599
    %796 = vmatpush1.bf16.msra.mxu0 %v598
    %797 = vmatprep.subr.bf16.mxu0 %v720
    %798 = vmatpush1.bf16.msra.mxu0 %v717
    %799 = vmatprep.subr.bf16.mxu0 0
    %800 = vmatpush1.bf16.msra.mxu0 0
    %801 = vmatprep.subr.bf16.mxu0 0
    %802 = vmatpush1.bf16.msra.mxu0 0
    %803 = vmatprep.subr.bf16.mxu0 0
    %804 = vmatpush1.bf16.msra.mxu0 0
    %805 = vmatprep.subr.bf16.mxu0 0
    %806 = vmatpush1.bf16.msra.mxu0 0
    %807 = vmatprep.subr.bf16.mxu0 0
    %808 = vmatpush1.bf16.msra.mxu0 0
    %809 = vmatprep.subr.bf16.mxu0 0
    %810 = vmatpush1.bf16.msra.mxu0 0
    %811 = vmatprep.mubr.bf16.mxu0 %v708
    %812 = vmatmul.mubr.bf16.gmra.mrb[0].mxu0 %v184
    %v813 = vpop.f32.mrb[0].mxu0
    %v814 = vadd.f32 %v763, %v813
    %v815 = vpop.f32.mrb[0].mxu0
    %v816 = vadd.f32 %v765, %v815
    %v817 = vpop.f32.mrb[0].mxu0
    %v818 = vadd.f32 %v767, %v817
    %v819 = vpop.f32.mrb[0].mxu0
    %v820 = vadd.f32 %v769, %v819
    %821 = vmatprep.mubr.bf16.mxu0 %v711
    %822 = vmatmul.mubr.bf16.gmra.mrb[0].mxu0 %v188
    %v823 = vpop.f32.mrb[0].mxu0
    %v824 = vadd.f32 %v773, %v823
    %v825 = vpop.f32.mrb[0].mxu0
    %v826 = vadd.f32 %v775, %v825
    %v827 = vpop.f32.mrb[0].mxu0
    %v828 = vpop.f32.mrb[0].mxu0
    %829 = vdwg.mxu0
    %830 = vmatprep.subr.bf16.mxu0 %v505
    %831 = vmatpush1.bf16.msra.mxu0 %v504
    %832 = vmatprep.subr.bf16.mxu0 %v509
    %833 = vmatpush1.bf16.msra.mxu0 %v508
    %834 = vmatprep.subr.bf16.mxu0 %v513
    %835 = vmatpush1.bf16.msra.mxu0 %v512
    %836 = vmatprep.subr.bf16.mxu0 %v517
    %837 = vmatpush1.bf16.msra.mxu0 %v516
    %838 = vmatprep.subr.bf16.mxu0 %v521
    %839 = vmatpush1.bf16.msra.mxu0 %v520
    %840 = vmatprep.subr.bf16.mxu0 %v525
    %841 = vmatpush1.bf16.msra.mxu0 %v524
    %842 = vmatprep.subr.bf16.mxu0 %v529
    %843 = vmatpush1.bf16.msra.mxu0 %v528
    %844 = vmatprep.subr.bf16.mxu0 %v533
    %845 = vmatpush1.bf16.msra.mxu0 %v532
    %846 = vmatprep.subr.bf16.mxu0 %v537
    %847 = vmatpush1.bf16.msra.mxu0 %v536
    %848 = vmatprep.subr.bf16.mxu0 %v541
    %849 = vmatpush1.bf16.msra.mxu0 %v540
    %850 = vmatprep.subr.bf16.mxu0 %v545
    %851 = vmatpush1.bf16.msra.mxu0 %v544
    %852 = vmatprep.subr.bf16.mxu0 %v549
    %853 = vmatpush1.bf16.msra.mxu0 %v548
    %854 = vmatprep.subr.bf16.mxu0 %v553
    %855 = vmatpush1.bf16.msra.mxu0 %v552
    %856 = vmatprep.subr.bf16.mxu0 %v557
    %857 = vmatpush1.bf16.msra.mxu0 %v556
    %858 = vmatprep.subr.bf16.mxu0 %v561
    %859 = vmatpush1.bf16.msra.mxu0 %v560
    %860 = vmatprep.subr.bf16.mxu0 %v565
    %861 = vmatpush1.bf16.msra.mxu0 %v564
    %862 = vmatprep.mubr.bf16.mxu0 %v183
    %863 = vmatmul.mubr.bf16.gmra.mrb[0].mxu0 %v182
    %v864 = vpop.f32.mrb[0].mxu0
    %v865 = vadd.f32 0.0, %v864
    %v866 = vpop.f32.mrb[0].mxu0
    %v867 = vadd.f32 0.0, %v866
    %v868 = vpop.f32.mrb[0].mxu0
    %v869 = vadd.f32 0.0, %v868
    %v870 = vpop.f32.mrb[0].mxu0
    %v871 = vadd.f32 0.0, %v870
    %872 = vmatprep.mubr.bf16.mxu0 %v187
    %873 = vmatmul.mubr.bf16.gmra.mrb[0].mxu0 %v186
    %v874 = vpop.f32.mrb[0].mxu0
    %v875 = vadd.f32 0.0, %v874
    %v876 = vpop.f32.mrb[0].mxu0
    %v877 = vadd.f32 0.0, %v876
    %v878 = vpop.f32.mrb[0].mxu0
    %v879 = vpop.f32.mrb[0].mxu0
    %880 = vdwg.mxu0
    %881 = vmatprep.subr.bf16.mxu0 %v569
    %882 = vmatpush1.bf16.msra.mxu0 %v568
    %883 = vmatprep.subr.bf16.mxu0 %v573
    %884 = vmatpush1.bf16.msra.mxu0 %v572
    %885 = vmatprep.subr.bf16.mxu0 %v577
    %886 = vmatpush1.bf16.msra.mxu0 %v576
    %887 = vmatprep.subr.bf16.mxu0 %v581
    %888 = vmatpush1.bf16.msra.mxu0 %v580
    %889 = vmatprep.subr.bf16.mxu0 %v585
    %890 = vmatpush1.bf16.msra.mxu0 %v584
    %891 = vmatprep.subr.bf16.mxu0 %v589
    %892 = vmatpush1.bf16.msra.mxu0 %v588
    %893 = vmatprep.subr.bf16.mxu0 %v593
    %894 = vmatpush1.bf16.msra.mxu0 %v592
    %895 = vmatprep.subr.bf16.mxu0 %v597
    %896 = vmatpush1.bf16.msra.mxu0 %v596
    %897 = vmatprep.subr.bf16.mxu0 %v601
    %898 = vmatpush1.bf16.msra.mxu0 %v600
    %899 = vmatprep.subr.bf16.mxu0 %v726
    %900 = vmatpush1.bf16.msra.mxu0 %v723
    %901 = vmatprep.subr.bf16.mxu0 0
    %902 = vmatpush1.bf16.msra.mxu0 0
    %903 = vmatprep.subr.bf16.mxu0 0
    %904 = vmatpush1.bf16.msra.mxu0 0
    %905 = vmatprep.subr.bf16.mxu0 0
    %906 = vmatpush1.bf16.msra.mxu0 0
    %907 = vmatprep.subr.bf16.mxu0 0
    %908 = vmatpush1.bf16.msra.mxu0 0
    %909 = vmatprep.subr.bf16.mxu0 0
    %910 = vmatpush1.bf16.msra.mxu0 0
    %911 = vmatprep.subr.bf16.mxu0 0
    %912 = vmatpush1.bf16.msra.mxu0 0
    %913 = vmatprep.mubr.bf16.mxu0 %v708
    %914 = vmatmul.mubr.bf16.gmra.mrb[0].mxu0 %v184
    %v915 = vpop.f32.mrb[0].mxu0
    %v916 = vadd.f32 %v865, %v915
    %v917 = vpop.f32.mrb[0].mxu0
    %v918 = vadd.f32 %v867, %v917
    %v919 = vpop.f32.mrb[0].mxu0
    %v920 = vadd.f32 %v869, %v919
    %v921 = vpop.f32.mrb[0].mxu0
    %v922 = vadd.f32 %v871, %v921
    %923 = vmatprep.mubr.bf16.mxu0 %v711
    %924 = vmatmul.mubr.bf16.gmra.mrb[0].mxu0 %v188
    %v925 = vpop.f32.mrb[0].mxu0
    %v926 = vadd.f32 %v875, %v925
    %v927 = vpop.f32.mrb[0].mxu0
    %v928 = vadd.f32 %v877, %v927
    %v929 = vpop.f32.mrb[0].mxu0
    %v930 = vpop.f32.mrb[0].mxu0
    %931 = vdwg.mxu0
    %v932 = vmul.f32 %v814, %v814
    %v933 = vmul.f32 %v816, %v816
    %v934 = vmul.f32 %v818, %v818
    %v935 = vmul.f32 %v820, %v820
    %v936 = vmul.f32 %v824, %v824
    %v937 = vmul.f32 %v826, %v826
    %v938 = vmul.f32 %v916, %v916
    %v939 = vmul.f32 %v918, %v918
    %v940 = vmul.f32 %v920, %v920
    %v941 = vmul.f32 %v922, %v922
    %v942 = vmul.f32 %v926, %v926
    %v943 = vmul.f32 %v928, %v928
    %v944 = vadd.f32 %v932, %v938
    %v945 = vadd.f32 %v933, %v939
    %v946 = vadd.f32 %v934, %v940
    %v947 = vadd.f32 %v935, %v941
    %v948 = vadd.f32 %v936, %v942
    %v949 = vadd.f32 %v937, %v943
    %v950 = vrsqrt.pop %v944
    %v951 = vmul.f32 %v944, %v950
    %vm952 = vcmp.eq.f32.partialorder %v944, inf
    %v953 = vsel %vm952, %v944, %v951
    %vm954 = vcmp.eq.f32.partialorder %v944, 0.0
    %v955 = vand.u32 %v944, 2147483648
    %v956 = vsel %vm954, %v955, %v953
    %v957 = vrsqrt.pop %v945
    %v958 = vmul.f32 %v945, %v957
    %vm959 = vcmp.eq.f32.partialorder %v945, inf
    %v960 = vsel %vm959, %v945, %v958
    %vm961 = vcmp.eq.f32.partialorder %v945, 0.0
    %v962 = vand.u32 %v945, 2147483648
    %v963 = vsel %vm961, %v962, %v960
    %v964 = vrsqrt.pop %v946
    %v965 = vmul.f32 %v946, %v964
    %vm966 = vcmp.eq.f32.partialorder %v946, inf
    %v967 = vsel %vm966, %v946, %v965
    %vm968 = vcmp.eq.f32.partialorder %v946, 0.0
    %v969 = vand.u32 %v946, 2147483648
    %v970 = vsel %vm968, %v969, %v967
    %v971 = vrsqrt.pop %v947
    %v972 = vmul.f32 %v947, %v971
    %vm973 = vcmp.eq.f32.partialorder %v947, inf
    %v974 = vsel %vm973, %v947, %v972
    %vm975 = vcmp.eq.f32.partialorder %v947, 0.0
    %v976 = vand.u32 %v947, 2147483648
    %v977 = vsel %vm975, %v976, %v974
    %v978 = vrsqrt.pop %v948
    %v979 = vmul.f32 %v948, %v978
    %vm980 = vcmp.eq.f32.partialorder %v948, inf
    %v981 = vsel %vm980, %v948, %v979
    %vm982 = vcmp.eq.f32.partialorder %v948, 0.0
    %v983 = vand.u32 %v948, 2147483648
    %v984 = vsel %vm982, %v983, %v981
    %v985 = vrsqrt.pop %v949
    %v986 = vmul.f32 %v949, %v985
    %vm987 = vcmp.eq.f32.partialorder %v949, inf
    %v988 = vsel %vm987, %v949, %v986
    %vm989 = vcmp.eq.f32.partialorder %v949, 0.0
    %v990 = vand.u32 %v949, 2147483648
    %v991 = vsel %vm989, %v990, %v988
    %v992 = vpack.c.bf16 %v970, %v956
    %v993 = vpack.c.bf16 %v977, %v963
    %v994 = vpack.c.bf16 %v984, %v984
    %v995 = vpack.c.bf16 %v991, %v991
    %v996 = vld [vmem:[#allocation6] sm:$0xf]
    %v997 = vld [vmem:[#allocation6 + $0x4] sm:$0xf]
    %v998 = vld [vmem:[#allocation6 + $0x8] sm:$0xf]
    %v999 = vld [vmem:[#allocation6 + $0xc] sm:$0xf]
    %v1000 = vld [vmem:[#allocation6 + $0x10] sm:$0xf]
    %v1001 = vld [vmem:[#allocation6 + $0x14] sm:$0xf]
    %v1002 = vld [vmem:[#allocation6 + $0x18] sm:$0xf]
    %v1003 = vld [vmem:[#allocation6 + $0x1c] sm:$0xf]
    %v1004 = vld [vmem:[#allocation6 + $0x20] sm:$0xf]
    %v1005 = vld [vmem:[#allocation6 + $0x24] sm:$0xf]
    %v1006 = vld [vmem:[#allocation6 + $0x28] sm:$0xf]
    %v1007 = vld [vmem:[#allocation6 + $0x2c] sm:$0xf]
    %v1008 = vld [vmem:[#allocation6 + $0x30] sm:$0xf]
    %v1009 = vld [vmem:[#allocation6 + $0x34] sm:$0xf]
    %v1010 = vld [vmem:[#allocation6 + $0x38] sm:$0xf]
    %v1011 = vld [vmem:[#allocation6 + $0x3c] sm:$0xf]
    %v1012 = vld [vmem:[#allocation6 + $0x40] sm:$0xf]
    %v1013 = vld [vmem:[#allocation6 + $0x44] sm:$0xf]
    %v1014 = vld [vmem:[#allocation6 + $0x48] sm:$0xf]
    %v1015 = vld [vmem:[#allocation6 + $0x4c] sm:$0xf]
    %v1016 = vld [vmem:[#allocation6 + $0x50] sm:$0xf]
    %v1017 = vld [vmem:[#allocation6 + $0x54] sm:$0xf]
    %v1018 = vld [vmem:[#allocation6 + $0x58] sm:$0xf]
    %v1019 = vld [vmem:[#allocation6 + $0x5c] sm:$0xf]
    %v1020 = vld [vmem:[#allocation6 + $0x60] sm:$0xf]
    %v1021 = vld [vmem:[#allocation6 + $0x64] sm:$0xf]
    %v1022 = vld [vmem:[#allocation6 + $0x68] sm:$0xf]
    %v1023 = vld [vmem:[#allocation6 + $0x6c] sm:$0xf]
    %v1024 = vld [vmem:[#allocation6 + $0x70] sm:$0xf]
    %v1025 = vld [vmem:[#allocation6 + $0x74] sm:$0xf]
    %v1026 = vld [vmem:[#allocation6 + $0x78] sm:$0xf]
    %v1027 = vld [vmem:[#allocation6 + $0x7c] sm:$0xf]
    %v1060 = vunpack.c.l.b16 %v996
    %v1061 = vunpack.c.l.b16 %v997
    %v1062 = vunpack.c.l.b16 %v998
    %v1063 = vunpack.c.l.b16 %v999
    %v1064 = vunpack.c.l.b16 %v1000
    %v1065 = vunpack.c.l.b16 %v1001
    %v1066 = vunpack.c.l.b16 %v1002
    %v1067 = vunpack.c.l.b16 %v1003
    %v1068 = vunpack.c.l.b16 %v1004
    %v1069 = vunpack.c.l.b16 %v1005
    %v1070 = vunpack.c.l.b16 %v1006
    %v1071 = vunpack.c.l.b16 %v1007
    %v1072 = vunpack.c.l.b16 %v1008
    %v1073 = vunpack.c.l.b16 %v1009
    %v1074 = vunpack.c.l.b16 %v1010
    %v1075 = vunpack.c.l.b16 %v1011
    %v1076 = vunpack.c.l.b16 %v1012
    %v1077 = vunpack.c.l.b16 %v1013
    %v1078 = vunpack.c.l.b16 %v1014
    %v1079 = vunpack.c.l.b16 %v1015
    %v1080 = vunpack.c.l.b16 %v1016
    %v1081 = vunpack.c.l.b16 %v1017
    %v1082 = vunpack.c.l.b16 %v1018
    %v1083 = vunpack.c.l.b16 %v1019
    %v1084 = vunpack.c.l.b16 %v1020
    %v1085 = vunpack.c.l.b16 %v1021
    %v1086 = vunpack.c.l.b16 %v1022
    %v1087 = vunpack.c.l.b16 %v1023
    %v1088 = vunpack.c.l.b16 %v1024
    %v1089 = vunpack.c.l.b16 %v1025
    %v1090 = vunpack.c.l.b16 %v1026
    %v1091 = vunpack.c.l.b16 %v1027
    %v1092 = vpack.c.b16 %v1061, %v1060
    %v1093 = vpack.c.b16 %v1063, %v1062
    %v1094 = vpack.c.b16 %v1065, %v1064
    %v1095 = vpack.c.b16 %v1067, %v1066
    %v1096 = vpack.c.b16 %v1069, %v1068
    %v1097 = vpack.c.b16 %v1071, %v1070
    %v1098 = vpack.c.b16 %v1073, %v1072
    %v1099 = vpack.c.b16 %v1075, %v1074
    %v1100 = vpack.c.b16 %v1077, %v1076
    %v1101 = vpack.c.b16 %v1079, %v1078
    %v1102 = vpack.c.b16 %v1081, %v1080
    %v1103 = vpack.c.b16 %v1083, %v1082
    %v1104 = vpack.c.b16 %v1085, %v1084
    %v1105 = vpack.c.b16 %v1087, %v1086
    %v1106 = vpack.c.b16 %v1089, %v1088
    %v1107 = vpack.c.b16 %v1091, %v1090
    %1124 = vmatprep.subr.bf16.mxu0 0
    %1125 = vmatpush1.bf16.msra.mxu0 %v1092
    %1126 = vmatprep.subr.bf16.mxu0 0
    %1127 = vmatpush1.bf16.msra.mxu0 %v1093
    %1128 = vmatprep.subr.bf16.mxu0 0
    %1129 = vmatpush1.bf16.msra.mxu0 %v1094
    %1130 = vmatprep.subr.bf16.mxu0 0
    %1131 = vmatpush1.bf16.msra.mxu0 %v1095
    %1132 = vmatprep.subr.bf16.mxu0 0
    %1133 = vmatpush1.bf16.msra.mxu0 %v1096
    %1134 = vmatprep.subr.bf16.mxu0 0
    %1135 = vmatpush1.bf16.msra.mxu0 %v1097
    %1136 = vmatprep.subr.bf16.mxu0 0
    %1137 = vmatpush1.bf16.msra.mxu0 %v1098
    %1138 = vmatprep.subr.bf16.mxu0 0
    %1139 = vmatpush1.bf16.msra.mxu0 %v1099
    %1140 = vmatprep.subr.bf16.mxu0 0
    %1141 = vmatpush1.bf16.msra.mxu0 %v1100
    %1142 = vmatprep.subr.bf16.mxu0 0
    %1143 = vmatpush1.bf16.msra.mxu0 %v1101
    %1144 = vmatprep.subr.bf16.mxu0 0
    %1145 = vmatpush1.bf16.msra.mxu0 %v1102
    %1146 = vmatprep.subr.bf16.mxu0 0
    %1147 = vmatpush1.bf16.msra.mxu0 %v1103
    %1148 = vmatprep.subr.bf16.mxu0 0
    %1149 = vmatpush1.bf16.msra.mxu0 %v1104
    %1150 = vmatprep.subr.bf16.mxu0 0
    %1151 = vmatpush1.bf16.msra.mxu0 %v1105
    %1152 = vmatprep.subr.bf16.mxu0 0
    %1153 = vmatpush1.bf16.msra.mxu0 %v1106
    %1154 = vmatprep.subr.bf16.mxu0 0
    %1155 = vmatpush1.bf16.msra.mxu0 %v1107
    %1156 = vmatprep.mubr.bf16.mxu0 %v993
    %1157 = vmatmul.mubr.bf16.gmra.mrb[0].mxu0 %v992
    %v1158 = vpop.f32.mrb[0].mxu0
    %v1159 = vadd.f32 0.0, %v1158
    %v1160 = vpop.f32.mrb[0].mxu0
    %v1161 = vpop.f32.mrb[0].mxu0
    %v1162 = vadd.f32 0.0, %v1161
    %v1163 = vpop.f32.mrb[0].mxu0
    %1164 = vmatprep.mubr.bf16.mxu0 %v995
    %1165 = vmatmul.mubr.bf16.gmra.mrb[0].mxu0 %v994
    %v1166 = vpop.f32.mrb[0].mxu0
    %v1167 = vadd.f32 0.0, %v1166
    %v1168 = vpop.f32.mrb[0].mxu0
    %v1169 = vpop.f32.mrb[0].mxu0
    %v1170 = vpop.f32.mrb[0].mxu0
    %1171 = vdwg.mxu0
    %v1172 = vmax.f32 %v1159, 1e-05
    %v1173 = vmax.f32 %v1162, 1e-05
    %v1174 = vmax.f32 %v1167, 1e-05
    %v1175 = vlog2.pop %v1172
    %v1176 = vmul.f32 %v1175, 0.6931472
    %v1177 = vlog2.pop %v1173
    %v1178 = vmul.f32 %v1177, 0.6931472
    %v1179 = vlog2.pop %v1174
    %v1180 = vmul.f32 %v1179, 0.6931472
    %1181 = vxpose.xlu0.b32.start [1/16] %v1176, 128
    %1182 = vxpose.xlu0.b32.cont [2/16] %v1178, 128
    %1183 = vxpose.xlu0.b32.cont [3/16] %v1180, 128
    %1184 = vxpose.xlu0.b32.cont [4/16] 0.0, 128
    %1185 = vxpose.xlu0.b32.cont [5/16] 0.0, 128
    %1186 = vxpose.xlu0.b32.cont [6/16] 0.0, 128
    %1187 = vxpose.xlu0.b32.cont [7/16] 0.0, 128
    %1188 = vxpose.xlu0.b32.cont [8/16] 0.0, 128
    %1189 = vxpose.xlu0.b32.cont [9/16] 0.0, 128
    %1190 = vxpose.xlu0.b32.cont [10/16] 0.0, 128
    %1191 = vxpose.xlu0.b32.cont [11/16] 0.0, 128
    %1192 = vxpose.xlu0.b32.cont [12/16] 0.0, 128
    %1193 = vxpose.xlu0.b32.cont [13/16] 0.0, 128
    %1194 = vxpose.xlu0.b32.cont [14/16] 0.0, 128
    %1195 = vxpose.xlu0.b32.cont [15/16] 0.0, 128
    %1196 = vxpose.xlu0.b32.end [16/16] 0.0, 128
    %v1197 = vpop.trf.xlu0
    %v1198 = vpop.trf.xlu0
    %v1199 = vpop.trf.xlu0
    %v1200 = vpop.trf.xlu0
    %v1201 = vpop.trf.xlu0
    %v1202 = vpop.trf.xlu0
    %v1203 = vpop.trf.xlu0
    %v1204 = vpop.trf.xlu0
    %v1205 = vpop.trf.xlu0
    %v1206 = vpop.trf.xlu0
    %v1207 = vpop.trf.xlu0
    %v1208 = vpop.trf.xlu0
    %v1209 = vpop.trf.xlu0
    %v1210 = vpop.trf.xlu0
    %v1211 = vpop.trf.xlu0
    %v1212 = vpop.trf.xlu0
    %vm1213 = vcmask 195584
    %1214 = vst.msk [vmem:[%s3] sm:$0xff] %vm1213, %v1197
    %1215 = vst.msk [vmem:[%s3 + $0x8] sm:$0xff] %vm1213, %v1198
    %1216 = vst.msk [vmem:[%s3 + $0x10] sm:$0xff] %vm1213, %v1199
    %1217 = vst.msk [vmem:[%s3 + $0x18] sm:$0xff] %vm1213, %v1200
    %1218 = vst.msk [vmem:[%s3 + $0x20] sm:$0xff] %vm1213, %v1201
    %1219 = vst.msk [vmem:[%s3 + $0x28] sm:$0xff] %vm1213, %v1202
    %1220 = vst.msk [vmem:[%s3 + $0x30] sm:$0xff] %vm1213, %v1203
    %1221 = vst.msk [vmem:[%s3 + $0x38] sm:$0xff] %vm1213, %v1204
    %1222 = vst.msk [vmem:[%s3 + $0x40] sm:$0xff] %vm1213, %v1205
    %1223 = vst.msk [vmem:[%s3 + $0x48] sm:$0xff] %vm1213, %v1206
    %1224 = vst.msk [vmem:[%s3 + $0x50] sm:$0xff] %vm1213, %v1207
    %1225 = vst.msk [vmem:[%s3 + $0x58] sm:$0xff] %vm1213, %v1208
    %1226 = vst.msk [vmem:[%s3 + $0x60] sm:$0xff] %vm1213, %v1209
    %1227 = vst.msk [vmem:[%s3 + $0x68] sm:$0xff] %vm1213, %v1210
    %1228 = vst.msk [vmem:[%s3 + $0x70] sm:$0xff] %vm1213, %v1211
    %1229 = vst.msk [vmem:[%s3 + $0x78] sm:$0xff] %vm1213, %v1212
    // Predicated region
    $region26: #{tpu_custom_call.1} parent=1 // pred_check
      _
    $region27: #{tpu_custom_call.1} parent=1 // pred_check_branch
      %1231 = sbr.rel (0) target = $region29
    $region28: #{tpu_custom_call.1} parent=1 // pred_region
      _
    $region29: #{tpu_custom_call.1} parent=1 // pred_fallthru
      _
    // Predicated region
    $region30: #{tpu_custom_call.1} parent=1 // pred_check
      _
    $region31: #{tpu_custom_call.1} parent=1 // pred_check_branch
      %1233 = sbr.rel (0) target = $region33
    $region32: #{tpu_custom_call.1} parent=1 // pred_region
      _
    $region33: #{tpu_custom_call.1} parent=1 // pred_fallthru
      _
    %1234 = vsyncpa [#allocation3], 1
    %1235 = vsyncpa [#allocation5], 1

</llo_original>
